<compile_context>
chip_gen: v7x
topology: tpu7x:2x2x1
jax: 0.10.0
libtpu: 0.0.40
codegen_flags: <defaults>
</compile_context>

<pallas_src>
import numpy as np
import jax
import jax.numpy as jnp
from jax.experimental import pallas as pl
from jax.experimental.pallas import tpu as pltpu

LEAKY_SLOPE = 0.01   # nn.LeakyReLU default negative_slope
BN_EPS = 1e-5        # nn.BatchNorm1d default eps


def _round_up(x, m):
    return ((x + m - 1) // m) * m


def _choose_tiling(out_dim, max_tile_n):
    """Pick (n_pad, tile_n, num_tiles) with minimal lane padding.

    n_pad is a multiple of 128 (plus at most (num_tiles)*128 alignment slack),
    tile_n is a multiple of 128 targeting ~max_tile_n columns, and num_tiles is
    kept even (>= 2) when there is enough work so v7x's two TensorCores stay
    load-balanced under dimension_semantics=("parallel",).
    """
    n128 = _round_up(max(out_dim, 1), 128)
    units = n128 // 128
    max_units = max(1, _round_up(max_tile_n, 128) // 128)
    num_tiles = -(-units // max_units)            # ceil
    if units >= 2:
        num_tiles = max(num_tiles, 2)
        if num_tiles % 2:
            num_tiles += 1
    tile_n = _round_up(-(-n128 // num_tiles), 128)
    n_pad = num_tiles * tile_n
    return n_pad, tile_n, num_tiles


# --------------------------------------------------------------------------
# Pallas kernel: the only real HBM stream (wo_aug) tiled over N.
# --------------------------------------------------------------------------
def _lin_out_kernel(h_ref, wo_ref, out_ref):
    # h_ref:  (B, 33) bf16, resident across the whole grid.
    # wo_ref: (33, tile_n) bf16, streamed from HBM (double-buffered).
    # out_ref:(B, tile_n) f32, lane-dense store.
    out_ref[...] = jnp.dot(h_ref[...], wo_ref[...],
                           preferred_element_type=jnp.float32)


# --------------------------------------------------------------------------
# One-time packing of lin_out weight+bias into a padded bf16 slab.
# --------------------------------------------------------------------------
def prepare_lin_out(params, out_dim, *, max_tile_n=64 * 1024):
    n_pad, tile_n, num_tiles = _choose_tiling(out_dim, max_tile_n)
    wo_aug = jnp.concatenate(
        [params["wo"].astype(jnp.float32), params["bo"].astype(jnp.float32)],
        axis=0)                                            # (33, out_dim)
    wo_aug = jnp.pad(wo_aug, ((0, 0), (0, n_pad - out_dim))).astype(jnp.bfloat16)
    return {"wo_aug": wo_aug, "n_pad": n_pad, "tile_n": tile_n,
            "num_tiles": num_tiles}


# --------------------------------------------------------------------------
# Prologue (tiny): lin1 -> LeakyReLU -> BN -> lin2 -> LeakyReLU -> BN.
# B x 32 elements total; plain JAX, computed once per forward.
# TODO(synk): BatchNorm1d is training-mode batch statistics only; running
#             mean/var are not tracked and there is no eval() path.
# --------------------------------------------------------------------------
def _prologue(x, params):
    h = jnp.dot(x.astype(jnp.float32), params["w1"]) + params["b1"]
    h = jnp.where(h > 0, h, LEAKY_SLOPE * h)
    mu = jnp.mean(h, axis=0, keepdims=True)
    var = jnp.mean((h - mu) ** 2, axis=0, keepdims=True)    # biased, like PyTorch BN
    h = (h - mu) * jax.lax.rsqrt(var + BN_EPS) * params["g1"] + params["be1"]

    h = jnp.dot(h, params["w2"]) + params["b2"]
    h = jnp.where(h > 0, h, LEAKY_SLOPE * h)
    mu = jnp.mean(h, axis=0, keepdims=True)
    var = jnp.mean((h - mu) ** 2, axis=0, keepdims=True)
    h = (h - mu) * jax.lax.rsqrt(var + BN_EPS) * params["g2"] + params["be2"]
    return h                                                 # (B, 32) f32


def hypernet_forward_flat(x, params, packed, out_dim):
    """Runs the Pallas kernel; returns the flat (batch, out_dim) weight vector."""
    B = x.shape[0]
    wo_aug = packed["wo_aug"]
    n_pad = packed["n_pad"]
    tile_n = packed["tile_n"]
    num_tiles = packed["num_tiles"]
    rows_aug = wo_aug.shape[0]                               # 32 + 1 fused bias row

    # Hoisted prologue: one (B, 32) activation, cast to bf16, ones-column for the
    # fused bias row.  This is the single small resident kernel input.
    h = _prologue(x, params)
    h_aug = jnp.concatenate([h, jnp.ones((B, 1), jnp.float32)],
                            axis=1).astype(jnp.bfloat16)     # (B, 33)

    # VMEM budget: 2x double-buffered wo tiles + 2x output tiles + slack,
    # capped at 48 MiB so it also fits v7x's 64 MiB physical VMEM.
    bf16_rows = _round_up(rows_aug, 16)                      # bf16 sublane packing
    wo_tile_bytes = bf16_rows * tile_n * 2
    out_tile_bytes = _round_up(B, 8) * tile_n * 4
    vmem_limit = int(min(48 << 20,
                         max(32 << 20, 2 * wo_tile_bytes + 2 * out_tile_bytes
                             + (4 << 20))))

    cost = pl.CostEstimate(
        flops=2 * B * rows_aug * n_pad,
        transcendentals=0,
        bytes_accessed=(wo_aug.size * wo_aug.dtype.itemsize
                        + h_aug.size * h_aug.dtype.itemsize
                        + B * n_pad * 4),
    )

    out = pl.pallas_call(
        _lin_out_kernel,
        out_shape=jax.ShapeDtypeStruct((B, n_pad), jnp.float32),
        grid=(num_tiles,),
        in_specs=[
            # Tiny resident activation, pinned at a constant block index.
            pl.BlockSpec((B, rows_aug), lambda j: (0, 0)),       # h_aug (bf16)
            # The only real HBM stream: tiled over N, double-buffered.
            pl.BlockSpec((rows_aug, tile_n), lambda j: (0, j)),  # wo_aug (bf16)
        ],
        out_specs=pl.BlockSpec((B, tile_n), lambda j: (0, j)),
        compiler_params=pltpu.CompilerParams(
            dimension_semantics=("parallel",),   # shard N tiles across TCs (v7x)
            vmem_limit_bytes=vmem_limit),
        cost_estimate=cost,
    )(h_aug, wo_aug)

    # Strip lane padding BEFORE the wind/bind split.
    return out[:, :out_dim]


def split_weights(weights, weight_shapes, bias_shapes):
    """Glue: replicate the wl/bl slicing of HyperNetwork.forward."""
    wprods = [int(np.prod(s)) for s in weight_shapes]
    bprods = [int(np.prod(s)) for s in bias_shapes]
    wind = np.cumsum(wprods)                        # == self.wind
    bind = np.cumsum(bprods) + int(np.sum(wprods))  # == self.bind
    wl, bl = [], []
    # reference code hard-codes wind[14] (== total weight elements, 15 layers)
    wl.append(weights[:, :wind[0]].reshape(-1, *weight_shapes[0]))
    bl.append(weights[:, wind[14]:bind[0]].reshape(-1, *bias_shapes[0]))
    for i in range(len(weight_shapes) - 1):
        wl.append(weights[:, wind[i]:wind[i + 1]].reshape(-1, *weight_shapes[i + 1]))
        bl.append(weights[:, bind[i]:bind[i + 1]].reshape(-1, *bias_shapes[i + 1]))
    return wl, bl


def init_params(key, in_dim, out_dim, f_size, unet_nh):
    """Deterministic init matching the 'medium' hypernetwork __init__."""
    constant_scale = f_size * f_size * unet_nh
    init_std = lambda d: (2.0 / (d * constant_scale)) ** 0.5
    h1, h2 = 8, 32
    k1, k2, k3 = jax.random.split(key, 3)
    return {
        # Linear weights stored transposed: (in_features, out_features).
        "w1": jax.random.normal(k1, (in_dim, h1), jnp.float32) * init_std(in_dim),
        "b1": jnp.zeros((1, h1), jnp.float32),
        "g1": jnp.ones((1, h1), jnp.float32),    # BatchNorm1d weight (default 1)
        "be1": jnp.zeros((1, h1), jnp.float32),  # BatchNorm1d bias   (default 0)
        "w2": jax.random.normal(k2, (h1, h2), jnp.float32) * init_std(h1),
        "b2": jnp.zeros((1, h2), jnp.float32),
        "g2": jnp.ones((1, h2), jnp.float32),
        "be2": jnp.zeros((1, h2), jnp.float32),
        # lin_out kept f32 here; packed once into a padded bf16 slab by
        # prepare_lin_out (halves the dominant HBM stream; MXU accumulates f32).
        "wo": jax.random.normal(k3, (h2, out_dim), jnp.float32) * init_std(h2),
        "bo": jnp.zeros((1, out_dim), jnp.float32),
    }


if __name__ == "__main__":
    # Synthetic main-U-Net conv-layer shapes (15 layers, as the reference
    # forward's wind[14] indexing requires), kept tiny: unet_nh = 4.
    unet_nh = 4
    f_size = 3
    weight_shapes = ([(unet_nh, 2, f_size, f_size)]
                     + [(unet_nh, unet_nh, f_size, f_size)] * 13
                     + [(2, unet_nh, 1, 1)])
    bias_shapes = [(s[0],) for s in weight_shapes]
    out_dim = int(sum(int(np.prod(s)) for s in weight_shapes)
                  + sum(int(np.prod(s)) for s in bias_shapes))   # 2010

    in_dim = 1       # num_hyperparams
    batch = 2
    key = jax.random.PRNGKey(0)
    kx, kp = jax.random.split(key)

    params = init_params(kp, in_dim, out_dim, f_size, unet_nh)
    x = jax.random.uniform(kx, (batch, in_dim), jnp.float32)  # hyperparameter values

    # max_tile_n=512 here just to exercise a multi-step pipelined, even-length
    # grid at this tiny out_dim; for realistic hypernet out_dims the default
    # 64K-column (~4 MiB bf16) tile is used.
    packed = prepare_lin_out(params, out_dim, max_tile_n=512)
    flat = hypernet_forward_flat(x, params, packed, out_dim)
    jax.block_until_ready(flat)
    assert flat.shape == (batch, out_dim)

    wl, bl = split_weights(flat, weight_shapes, bias_shapes)
    jax.block_until_ready(wl + bl)
    assert wl[0].shape == (batch, *weight_shapes[0])
    assert bl[-1].shape == (batch, *bias_shapes[-1])

    print("KERNEL_OK")
</pallas_src>

<mosaic_0001>
module attributes {stable_mosaic.version = 11 : i64} {
  func.func @_lin_out_kernel(%arg0: i32, %arg1: memref<2x33xbf16, #tpu.memory_space<vmem>>, %arg2: memref<33x512xbf16, #tpu.memory_space<vmem>>, %arg3: memref<2x512xf32, #tpu.memory_space<vmem>>) attributes {dimension_semantics = [#tpu.dimension_semantics<parallel>], iteration_bounds = array<i64: 4>, scalar_prefetch = 0 : i64, scratch_operands = 0 : i64, tpu.core_type = #tpu.core_type<tc>, window_params = [{pipeline_mode = #tpu.pipeline_mode<synchronous>, transform_indices = @transform_0, window_bounds = array<i64: 2, 33>}, {transform_indices = @transform_1, window_bounds = array<i64: 33, 512>}, {transform_indices = @transform_2, window_bounds = array<i64: 2, 512>}]} {
    %c0 = arith.constant 0 : index
    %c0_0 = arith.constant 0 : index
    %0 = vector.load %arg1[%c0, %c0_0] : memref<2x33xbf16, #tpu.memory_space<vmem>>, vector<2x33xbf16>
    %c0_1 = arith.constant 0 : index
    %c0_2 = arith.constant 0 : index
    %1 = vector.load %arg2[%c0_1, %c0_2] : memref<33x512xbf16, #tpu.memory_space<vmem>>, vector<33x512xbf16>
    %cst = arith.constant dense<0.000000e+00> : vector<2x512xf32>
    %2 = tpu.matmul %0, %1, %cst {dimension_numbers = #tpu.dot_dimension_numbers<[1], [0], [0], [1], [0, 0, 1, 1], [], []>} : vector<2x33xbf16>, vector<33x512xbf16>, vector<2x512xf32> -> vector<2x512xf32>
    %c0_3 = arith.constant 0 : index
    %c0_4 = arith.constant 0 : index
    %3 = vector.load %arg3[%c0_3, %c0_4] : memref<2x512xf32, #tpu.memory_space<vmem>>, vector<2x512xf32>
    tpu.vector_store %arg3[%c0_3, %c0_4], %2 {strides = array<i32>} : memref<2x512xf32, #tpu.memory_space<vmem>>, vector<2x512xf32>,
    return
  }
  func.func @transform_0(%arg0: i32) -> (i32, i32) {
    %c0_i32 = arith.constant 0 : i32
    %c0_i32_0 = arith.constant 0 : i32
    %c0_i32_1 = arith.constant 0 : i32
    return %c0_i32, %c0_i32_0 : i32, i32
  }
  func.func @transform_1(%arg0: i32) -> (i32, i32) {
    %c0_i32 = arith.constant 0 : i32
    %c0_i32_0 = arith.constant 0 : i32
    return %c0_i32, %arg0 : i32, i32
  }
  func.func @transform_2(%arg0: i32) -> (i32, i32) {
    %c0_i32 = arith.constant 0 : i32
    %c0_i32_0 = arith.constant 0 : i32
    return %c0_i32, %arg0 : i32, i32
  }
}

</mosaic_0001>

<llo_original>
// kernel: tpu_custom_call.1
$region0: #{tpu_custom_call.1}
  #allocation0 [shape = 'u32[]', space=smem, size = 0x4, offset = 0x4, fixed_abs, tag = 'smem constant byte address 0x4 - core index']
  #allocation1 [shape = 'u32[144,128]{1,0:T(1,128)}', space=vmem, size = 0x12000, scoped, tag = 'internal scratch']
  %s0 = inlined_call_operand.hbm [shape: bf16[2,33], index: 0, kind: input, shape index: {}]
  %s1 = inlined_call_operand.hbm [shape: bf16[33,2048], index: 1, kind: input, shape index: {}]
  %s2 = inlined_call_operand.hbm [shape: f32[2,2048], index: 2, kind: output, shape index: {}]
  %s3 = sld [smem:[#allocation0]]
  $region49: #{tpu_custom_call.1} parent=0
    _
  %s5 = ssub.s32 1, %s3
  %s6 = scalar_select 0, %s5, %s3
  $region1: #{tpu_custom_call.1} parent=0
    #allocation2 [shape = 'u8[512]{0}', space=vmem, size = 0x400, scoped, tag = 'input window, operand 0, single buffered']
    #allocation3 [shape = 's32[2]{0}', space=sflag, size = 0x8, scoped, tag = 'scoped memory for tpu_custom_call.1']
    #allocation4 [shape = 's32[2]{0}', space=sflag, size = 0x8, scoped, tag = 'scoped memory for tpu_custom_call.1']
    #allocation5 [shape = 'u8[81920]{0}', space=vmem, size = 0x14000, scoped, tag = 'input window, operand 1']
    #allocation6 [shape = 's32[2]{0}', space=sflag, size = 0x8, scoped, tag = 'scoped memory for tpu_custom_call.1']
    #allocation7 [shape = 'u8[8192]{0}', space=vmem, size = 0x2000, scoped, tag = 'output window, operand 0']
    %7 = vsyncpa [#allocation3], 0
    %8 = vsyncpa [#allocation6], 0
    %s9 = scalar_lea.sflag [#allocation6], 1
    %10 = vsyncpa %s9, 0
    %11 = vsyncpa [#allocation4], 0
    %s12 = scalar_lea.sflag [#allocation4], 1
    %13 = vsyncpa %s12, 0
    loop: start=0, step=1, limit=6
    $region2: #{tpu_custom_call.1} parent=1 // loop_pre_header
      _
    $region3: #{tpu_custom_call.1} parent=1 // loop_header
      %s15 = sphi 0, %s19
      %p16 = scmp.ge.s32.totalorder %s15, 6
      %s23 = sphi 0, %s23
      %s25 = sphi 0, %s23
      %s26 = sphi 0, %s25
      %s40 = sphi 0, %s26
      %s46 = sphi 0, %s48
      %s49 = sphi 0, %s46
      %s50 = sphi 0, %s49
      %s66 = sphi 0, %s50
      %s72 = sphi 0, %s74
      %s75 = sphi 0, %s72
      %s76 = sphi 0, %s75
      %s92 = sphi 0, %s76
    $region4: #{tpu_custom_call.1} parent=1 // loop_header_branch
      %18 = sbr.rel (%p16) target = $region8
    $region5: #{tpu_custom_call.1} parent=1 // loop_body
      %s20 = ssub.s32 %s15, 1
      %s21 = ssub.s32 %s15, 2
      %s22 = sadd.s32 %s15, 1
      %s24 = sadd.s32 %s23, 1
      %p27 = scmp.eq.s32.totalorder %s15, 3
      %p28 = scmp.ne.s32.totalorder %s23, %s25
      %p29 = scmp.eq.s32.totalorder %s15, 0
      %p30 = por %p28, %p29
      %p31 = scmp.ne.s32.totalorder %s23, %s25
      %p32 = scmp.eq.s32.totalorder %s20, 3
      %p33 = por %p31, %p32
      %p34 = scmp.ne.s32.totalorder %s25, %s26
      %p35 = scmp.eq.s32.totalorder %s20, 0
      %p36 = por %p34, %p35
      %p37 = scmp.ne.s32.totalorder %s25, %s26
      %p38 = scmp.eq.s32.totalorder %s21, 3
      %p39 = por %p37, %p38
      %p41 = scmp.ne.s32.totalorder %s26, %s40
      %p42 = scmp.eq.s32.totalorder %s21, 0
      %p43 = por %p41, %p42
      %s44 = ssub.s32 %s15, %s22
      %p45 = scmp.eq.s32.totalorder %s44, 0
      %s47 = sadd.s32 %s46, 1
      %s48 = scalar_select %p45, %s46, %s47
      %p51 = pneg %p45
      %p52 = scmp.eq.s32.totalorder %s15, 3
      %p53 = por %p51, %p52
      %p54 = scmp.ne.s32.totalorder %s46, %s49
      %p55 = scmp.eq.s32.totalorder %s15, 0
      %p56 = por %p54, %p55
      %p57 = scmp.ne.s32.totalorder %s46, %s49
      %p58 = scmp.eq.s32.totalorder %s20, 3
      %p59 = por %p57, %p58
      %p60 = scmp.ne.s32.totalorder %s49, %s50
      %p61 = scmp.eq.s32.totalorder %s20, 0
      %p62 = por %p60, %p61
      %p63 = scmp.ne.s32.totalorder %s49, %s50
      %p64 = scmp.eq.s32.totalorder %s21, 3
      %p65 = por %p63, %p64
      %p67 = scmp.ne.s32.totalorder %s50, %s66
      %p68 = scmp.eq.s32.totalorder %s21, 0
      %p69 = por %p67, %p68
      %s70 = ssub.s32 %s15, %s22
      %p71 = scmp.eq.s32.totalorder %s70, 0
      %s73 = sadd.s32 %s72, 1
      %s74 = scalar_select %p71, %s72, %s73
      %p77 = pneg %p71
      %p78 = scmp.eq.s32.totalorder %s15, 3
      %p79 = por %p77, %p78
      %p80 = scmp.ne.s32.totalorder %s72, %s75
      %p81 = scmp.eq.s32.totalorder %s15, 0
      %p82 = por %p80, %p81
      %p83 = scmp.ne.s32.totalorder %s72, %s75
      %p84 = scmp.eq.s32.totalorder %s20, 3
      %p85 = por %p83, %p84
      %p86 = scmp.ne.s32.totalorder %s75, %s76
      %p87 = scmp.eq.s32.totalorder %s20, 0
      %p88 = por %p86, %p87
      %p89 = scmp.ne.s32.totalorder %s75, %s76
      %p90 = scmp.eq.s32.totalorder %s21, 3
      %p91 = por %p89, %p90
      %p93 = scmp.ne.s32.totalorder %s76, %s92
      %p94 = scmp.eq.s32.totalorder %s21, 0
      %p95 = por %p93, %p94
      %p96 = scmp.le.s32.totalorder 1, %s15
      %p97 = scmp.lt.s32.totalorder %s15, 5
      %p98 = pnand %p96, %p97
      %p99 = pneg %p98
      // Predicated region
      $region9: #{tpu_custom_call.1} parent=5 // pred_check
        _
      $region10: #{tpu_custom_call.1} parent=5 // pred_check_branch
        %101 = sbr.rel (%p98) target = $region12
      $region11: #{tpu_custom_call.1} parent=5 // pred_region
        %s102 = ssub.s32 %s15, 1
        // Predicated region
        $region13: #{tpu_custom_call.1} parent=11 // pred_check
          %p103 = pneg %p36
        $region14: #{tpu_custom_call.1} parent=11 // pred_check_branch
          %105 = sbr.rel (%p103) target = $region16
        $region15: #{tpu_custom_call.1} parent=11 // pred_region
          %s107 = ssub.s32 16, 16
          %108 = vsyncadd [#allocation3], %s107
          %s110 = sshll.u32 [#allocation2], 4
          %s111 = int_to_ptr.vmem [resolvable:$true] %s110
          %113 = dma.hbm_to_vmem [thread:$0]  %s0, 16, %s111, [#allocation3]
        $region16: #{tpu_custom_call.1} parent=11 // pred_fallthru
          _
      $region12: #{tpu_custom_call.1} parent=5 // pred_fallthru
        _
      %p114 = scmp.lt.s32.totalorder %s15, 4
      // Predicated region
      $region17: #{tpu_custom_call.1} parent=5 // pred_check
        %p115 = pneg %p114
      $region18: #{tpu_custom_call.1} parent=5 // pred_check_branch
        %117 = sbr.rel (%p115) target = $region20
      $region19: #{tpu_custom_call.1} parent=5 // pred_region
        // Predicated region
        $region21: #{tpu_custom_call.1} parent=19 // pred_check
          %p118 = pneg %p56
        $region22: #{tpu_custom_call.1} parent=19 // pred_check_branch
          %120 = sbr.rel (%p118) target = $region24
        $region23: #{tpu_custom_call.1} parent=19 // pred_region
          %s121 = sand.u32 %s46, 1
          %s122 = scalar_lea.sflag [#allocation6], %s121
          %s123 = sand.u32 %s46, 1
          %s124 = smul.addr %s123, 80
          %s125 = scalar_lea.vmem [#allocation5], %s124
          %s126 = smul.u32 4, %s15
          %s128 = ssub.s32 1280, 1280
          %129 = vsyncadd %s122, %s128
          %s130 = smul.addr %s126, 64
          %s131 = scalar_lea.hbm %s1, %s130
          %s132 = sshll.u32 %s125, 4
          %s133 = int_to_ptr.vmem [resolvable:$true] %s132
          %138 = dma.hbm_to_vmem [thread:$0]  %s131, 1280, %s133, %s122, 1024, 256, 16
        $region24: #{tpu_custom_call.1} parent=19 // pred_fallthru
          _
      $region20: #{tpu_custom_call.1} parent=5 // pred_fallthru
        _
      %p139 = scmp.le.s32.totalorder 1, %s15
      %p140 = scmp.lt.s32.totalorder %s15, 5
      %p141 = pnand %p139, %p140
      %p142 = pneg %p141
      // Predicated region
      $region25: #{tpu_custom_call.1} parent=5 // pred_check
        _
      $region26: #{tpu_custom_call.1} parent=5 // pred_check_branch
        %144 = sbr.rel (%p141) target = $region28
      $region27: #{tpu_custom_call.1} parent=5 // pred_region
        %s145 = ssub.s32 %s15, 1
        // Predicated region
        $region29: #{tpu_custom_call.1} parent=27 // pred_check
          %p146 = pneg %p36
        $region30: #{tpu_custom_call.1} parent=27 // pred_check_branch
          %148 = sbr.rel (%p146) target = $region32
        $region31: #{tpu_custom_call.1} parent=27 // pred_region
          %149 = dma.done [#allocation3], 16
        $region32: #{tpu_custom_call.1} parent=27 // pred_fallthru
          _
        %s150 = sand.u32 %s49, 1
        %s151 = scalar_lea.sflag [#allocation6], %s150
        %s152 = sand.u32 %s49, 1
        %s153 = smul.addr %s152, 80
        %s154 = scalar_lea.vmem [#allocation5], %s153
        // Predicated region
        $region33: #{tpu_custom_call.1} parent=27 // pred_check
          %p155 = pneg %p62
        $region34: #{tpu_custom_call.1} parent=27 // pred_check_branch
          %157 = sbr.rel (%p155) target = $region36
        $region35: #{tpu_custom_call.1} parent=27 // pred_region
          %158 = dma.done %s151, 1280
        $region36: #{tpu_custom_call.1} parent=27 // pred_fallthru
          _
        %p159 = pneg %p36
        %p160 = pneg %p33
        %s161 = sand.u32 %s49, 1
        %s162 = scalar_lea.sflag [#allocation6], %s161
        %s163 = sand.u32 %s49, 1
        %s164 = smul.addr %s163, 80
        %s165 = scalar_lea.vmem [#allocation5], %s164
        %p166 = pneg %p62
        %p167 = pneg %p59
        %p168 = pneg %p88
        %p169 = pneg %p85
        %s170 = sand.u32 %s75, 1
        %s171 = scalar_lea.sflag [#allocation4], %s170
        %s172 = sand.u32 %s75, 1
        %s173 = smul.addr %s172, 8
        %s174 = scalar_lea.vmem [#allocation7], %s173
        %s175 = smul.u32 4, %s20
        %s176 = smul.u32 4, %s20
        %v178 = vld [vmem:[#allocation2] sm:$0x1]
        %v179 = vld [vmem:[%s154] sm:$0xff]
        %v180 = vld [vmem:[%s154 + $0x8] sm:$0xff]
        %v181 = vld [vmem:[%s154 + $0x10] sm:$0xff]
        %v182 = vld [vmem:[%s154 + $0x18] sm:$0xff]
        %v183 = vld [vmem:[%s154 + $0x20] sm:$0xff]
        %v184 = vld [vmem:[%s154 + $0x28] sm:$0xff]
        %v185 = vld [vmem:[%s154 + $0x30] sm:$0xff]
        %v186 = vld [vmem:[%s154 + $0x38] sm:$0xff]
        %v187 = vld [vmem:[%s154 + $0x40] sm:$0x11]
        %v188 = vld [vmem:[%s154 + $0x48] sm:$0x11]
        %v199 = vunpack.c.l.b16 %v179
        %v200 = vunpack.c.h.b16 %v179
        %v201 = vunpack.c.l.b16 %v180
        %v202 = vunpack.c.h.b16 %v180
        %v203 = vunpack.c.l.b16 %v181
        %v204 = vunpack.c.h.b16 %v181
        %v205 = vunpack.c.l.b16 %v182
        %v206 = vunpack.c.h.b16 %v182
        %v207 = vunpack.c.l.b16 %v183
        %v208 = vunpack.c.h.b16 %v183
        %v209 = vunpack.c.l.b16 %v184
        %v210 = vunpack.c.h.b16 %v184
        %v211 = vunpack.c.l.b16 %v185
        %v212 = vunpack.c.h.b16 %v185
        %v213 = vunpack.c.l.b16 %v186
        %v214 = vunpack.c.h.b16 %v186
        %v215 = vunpack.c.l.b16 %v187
        %v216 = vunpack.c.h.b16 %v187
        %v217 = vunpack.c.l.b16 %v188
        %v218 = vunpack.c.h.b16 %v188
        %v219 = vpack.c.b16 %v203, %v199
        %v220 = vpack.c.b16 %v204, %v200
        %v221 = vpack.c.b16 %v205, %v201
        %v222 = vpack.c.b16 %v206, %v202
        %v223 = vpack.c.b16 %v211, %v207
        %v224 = vpack.c.b16 %v212, %v208
        %v225 = vpack.c.b16 %v213, %v209
        %v226 = vpack.c.b16 %v214, %v210
        %v227 = vpack.c.b16 %v215, %v215
        %v228 = vpack.c.b16 %v216, %v216
        %v229 = vpack.c.b16 %v217, %v217
        %v230 = vpack.c.b16 %v218, %v218
        %vm239 = vcmask 269312
        %v241 = vsel %vm239, %v178, 0
        %vm243 = vcmask 1040384
        %v244 = vsel 0, 4294967295, 65535
        %v245 = vsel %vm243, %v244, 0
        %v247 = vand.u32 %v227, %v245
        %v250 = vand.u32 %v228, %v245
        %v253 = vand.u32 %v229, %v245
        %v256 = vand.u32 %v230, %v245
        %258 = vmatprep.subr.bf16.mxu0 %v220
        %259 = vmatpush1.bf16.msra.mxu0 %v219
        %260 = vmatprep.subr.bf16.mxu0 %v224
        %261 = vmatpush1.bf16.msra.mxu0 %v223
        %262 = vmatprep.subr.bf16.mxu0 %v250
        %263 = vmatpush1.bf16.msra.mxu0 %v247
        %264 = vmatprep.subr.bf16.mxu0 0
        %265 = vmatpush1.bf16.msra.mxu0 0
        %266 = vmatprep.subr.bf16.mxu0 0
        %267 = vmatpush1.bf16.msra.mxu0 0
        %268 = vmatprep.subr.bf16.mxu0 0
        %269 = vmatpush1.bf16.msra.mxu0 0
        %270 = vmatprep.subr.bf16.mxu0 0
        %271 = vmatpush1.bf16.msra.mxu0 0
        %272 = vmatprep.subr.bf16.mxu0 0
        %273 = vmatpush1.bf16.msra.mxu0 0
        %274 = vmatprep.subr.bf16.mxu0 0
        %275 = vmatpush1.bf16.msra.mxu0 0
        %276 = vmatprep.subr.bf16.mxu0 0
        %277 = vmatpush1.bf16.msra.mxu0 0
        %278 = vmatprep.subr.bf16.mxu0 0
        %279 = vmatpush1.bf16.msra.mxu0 0
        %280 = vmatprep.subr.bf16.mxu0 0
        %281 = vmatpush1.bf16.msra.mxu0 0
        %282 = vmatprep.subr.bf16.mxu0 0
        %283 = vmatpush1.bf16.msra.mxu0 0
        %284 = vmatprep.subr.bf16.mxu0 0
        %285 = vmatpush1.bf16.msra.mxu0 0
        %286 = vmatprep.subr.bf16.mxu0 0
        %287 = vmatpush1.bf16.msra.mxu0 0
        %288 = vmatprep.subr.bf16.mxu0 0
        %289 = vmatpush1.bf16.msra.mxu0 0
        %290 = vmatprep.mubr.bf16.mxu0 0
        %291 = vmatmul.mubr.bf16.gmra.mrb[0].mxu0 %v241
        %v292 = vpop.f32.mrb[0].mxu0
        %v293 = vadd.f32 0.0, %v292
        %v294 = vpop.f32.mrb[0].mxu0
        %v295 = vadd.f32 0.0, %v294
        %v296 = vpop.f32.mrb[0].mxu0
        %v297 = vpop.f32.mrb[0].mxu0
        %298 = vdwg.mxu0
        %299 = vmatprep.subr.bf16.mxu0 %v222
        %300 = vmatpush1.bf16.msra.mxu0 %v221
        %301 = vmatprep.subr.bf16.mxu0 %v226
        %302 = vmatpush1.bf16.msra.mxu0 %v225
        %303 = vmatprep.subr.bf16.mxu0 %v256
        %304 = vmatpush1.bf16.msra.mxu0 %v253
        %305 = vmatprep.subr.bf16.mxu0 0
        %306 = vmatpush1.bf16.msra.mxu0 0
        %307 = vmatprep.subr.bf16.mxu0 0
        %308 = vmatpush1.bf16.msra.mxu0 0
        %309 = vmatprep.subr.bf16.mxu0 0
        %310 = vmatpush1.bf16.msra.mxu0 0
        %311 = vmatprep.subr.bf16.mxu0 0
        %312 = vmatpush1.bf16.msra.mxu0 0
        %313 = vmatprep.subr.bf16.mxu0 0
        %314 = vmatpush1.bf16.msra.mxu0 0
        %315 = vmatprep.subr.bf16.mxu0 0
        %316 = vmatpush1.bf16.msra.mxu0 0
        %317 = vmatprep.subr.bf16.mxu0 0
        %318 = vmatpush1.bf16.msra.mxu0 0
        %319 = vmatprep.subr.bf16.mxu0 0
        %320 = vmatpush1.bf16.msra.mxu0 0
        %321 = vmatprep.subr.bf16.mxu0 0
        %322 = vmatpush1.bf16.msra.mxu0 0
        %323 = vmatprep.subr.bf16.mxu0 0
        %324 = vmatpush1.bf16.msra.mxu0 0
        %325 = vmatprep.subr.bf16.mxu0 0
        %326 = vmatpush1.bf16.msra.mxu0 0
        %327 = vmatprep.subr.bf16.mxu0 0
        %328 = vmatpush1.bf16.msra.mxu0 0
        %329 = vmatprep.subr.bf16.mxu0 0
        %330 = vmatpush1.bf16.msra.mxu0 0
        %331 = vmatprep.mubr.bf16.mxu0 0
        %332 = vmatmul.mubr.bf16.gmra.mrb[0].mxu0 %v241
        %v333 = vpop.f32.mrb[0].mxu0
        %v334 = vadd.f32 0.0, %v333
        %v335 = vpop.f32.mrb[0].mxu0
        %v336 = vadd.f32 0.0, %v335
        %v337 = vpop.f32.mrb[0].mxu0
        %v338 = vpop.f32.mrb[0].mxu0
        %339 = vdwg.mxu0
        %v344 = vcombine.low %v293, %v295
        %v345 = vcombine.low %v334, %v336
        %v347 = vunpack.c.l.s4 1983009808
        %v348 = vunpack.c.0.s8 %v347
        %v349 = vlaneseq
        %v350 = vshrl.u32 %v349, 7
        %v351 = vsub.s32 %v348, %v350
        %v352 = vrot.slane %v344, %v351
        %v354 = vunpack.c.l.s4 1983009808
        %v355 = vunpack.c.0.s8 %v354
        %v356 = vlaneseq
        %v357 = vshrl.u32 %v356, 7
        %v358 = vsub.s32 %v355, %v357
        %v359 = vrot.slane %v345, %v358
        %v360 = vcombine.low %v352, %v359
        %362 = vst [vmem:[%s174] sm:$0xff] %v360
        %s363 = sand.u32 %s75, 1
        %s364 = scalar_lea.sflag [#allocation4], %s363
        %s365 = sand.u32 %s75, 1
        %s366 = smul.addr %s365, 8
        %s367 = scalar_lea.vmem [#allocation7], %s366
        // Predicated region
        $region37: #{tpu_custom_call.1} parent=27 // pred_check
          %p368 = pneg %p85
        $region38: #{tpu_custom_call.1} parent=27 // pred_check_branch
          %370 = sbr.rel (%p368) target = $region40
        $region39: #{tpu_custom_call.1} parent=27 // pred_region
          %s371 = smul.u32 4, %s20
          %s373 = ssub.s32 128, 128
          %374 = vsyncadd %s364, %s373
          %s375 = smul.addr %s371, 32
          %s376 = scalar_lea.hbm %s2, %s375
          %s378 = sshll.u32 %s367, 4
          %s379 = int_to_ptr.vmem [resolvable:$true] %s378
          %381 = dma.vmem_to_hbm [thread:$0]  %s379, 128, %s376, %s364
        $region40: #{tpu_custom_call.1} parent=27 // pred_fallthru
          _
      $region28: #{tpu_custom_call.1} parent=5 // pred_fallthru
        _
      %p382 = scmp.le.s32.totalorder 2, %s15
      // Predicated region
      $region41: #{tpu_custom_call.1} parent=5 // pred_check
        %p383 = pneg %p382
      $region42: #{tpu_custom_call.1} parent=5 // pred_check_branch
        %385 = sbr.rel (%p383) target = $region44
      $region43: #{tpu_custom_call.1} parent=5 // pred_region
        %s386 = ssub.s32 %s15, 2
        // Predicated region
        $region45: #{tpu_custom_call.1} parent=43 // pred_check
          %p387 = pneg %p91
        $region46: #{tpu_custom_call.1} parent=43 // pred_check_branch
          %389 = sbr.rel (%p387) target = $region48
        $region47: #{tpu_custom_call.1} parent=43 // pred_region
          %s390 = sand.u32 %s76, 1
          %s391 = scalar_lea.sflag [#allocation4], %s390
          %s392 = sand.u32 %s76, 1
          %s393 = smul.addr %s392, 8
          %s394 = scalar_lea.vmem [#allocation7], %s393
          %395 = dma.done %s391, 128
        $region48: #{tpu_custom_call.1} parent=43 // pred_fallthru
          _
      $region44: #{tpu_custom_call.1} parent=5 // pred_fallthru
        _
    $region6: #{tpu_custom_call.1} parent=1 // loop_footer
      %s19 = sadd.s32 1, %s15
    $region7: #{tpu_custom_call.1} parent=1 // loop_footer_branch
      %14 = sbr.rel target = $region3
    $region8: #{tpu_custom_call.1} parent=1 // loop_exit
      _
    %396 = vsyncpa [#allocation3], 1
    %s397 = scalar_lea.sflag [#allocation3], 1
    %398 = vsyncpa %s397, 1
    %399 = vsyncpa [#allocation6], 1
    %s400 = scalar_lea.sflag [#allocation6], 1
    %401 = vsyncpa %s400, 1
    %402 = vsyncpa [#allocation4], 1
    %s403 = scalar_lea.sflag [#allocation4], 1
    %404 = vsyncpa %s403, 1

</llo_original>
